<compile_context>
chip_gen: v6e
topology: v6e:2x2x1
jax: 0.10.0
libtpu: 0.0.40
codegen_flags: <defaults>
</compile_context>

<pallas_src>
import functools

import jax
import jax.numpy as jnp
from jax.experimental import pallas as pl
from jax.experimental.pallas import tpu as pltpu


# ----------------------------- tiling constants -----------------------------

_LANE = 128
_SUBLANE_BF16 = 16
_MAX_TM = 512
_MAX_TN = 512


def _round_up(x, m):
    return (x + m - 1) // m * m


def _tpu_vmem_capacity():
    # Generation-aware budgets: v5e/v6e have 128 MiB VMEM, v7x 64 MiB per TC.
    try:
        info = pltpu.get_tpu_info()
        cap = int(getattr(info, "vmem_capacity_bytes", 0) or 0)
        if cap > 0:
            return cap
    except Exception:
        pass
    return 64 * 1024 * 1024          # conservative fallback (v7x-sized)


_VMEM_CAP = _tpu_vmem_capacity()
_BIG_VMEM = _VMEM_CAP >= (100 << 20)
_VMEM_LIMIT = int(min(_VMEM_CAP * 3 // 4, 100 << 20))
_MAX_K_BLOCK_BYTES = (6 << 20) if _BIG_VMEM else (3 << 20)
_FUSED_W_BUDGET = (6 << 20) if _BIG_VMEM else (3 << 20)


def _choose_tn(n_pad):
    if n_pad <= _MAX_TN:
        return n_pad
    for cand in (512, 384, 256, 128):
        if n_pad % cand == 0:
            return cand
    return _LANE


def _choose_tk(k_pad, tm, tn):
    if k_pad * max(tm, tn) * 2 <= _MAX_K_BLOCK_BYTES:
        return k_pad
    for cand in (1024, 768, 512, 384, 256, 128):
        if k_pad % cand == 0:
            return cand
    return _LANE


# ----------------------------- Pallas kernels -----------------------------

def _mm_bias_kernel(x_ref, w_ref, b_ref, o_ref, *, relu):
    acc = jnp.dot(x_ref[...], w_ref[...], preferred_element_type=jnp.float32)
    out = acc + b_ref[...]
    if relu:
        out = jnp.maximum(out, 0.0)
    o_ref[...] = out.astype(o_ref.dtype)


def _mm_bias_res_kernel(x_ref, w_ref, b_ref, r_ref, o_ref, *, relu):
    acc = jnp.dot(x_ref[...], w_ref[...], preferred_element_type=jnp.float32)
    out = acc + b_ref[...] + r_ref[...].astype(jnp.float32)
    if relu:
        out = jnp.maximum(out, 0.0)
    o_ref[...] = out.astype(o_ref.dtype)


def _mm_bias_ktiled_kernel(x_ref, w_ref, b_ref, o_ref, acc_ref, *, relu):
    part = jnp.dot(x_ref[...], w_ref[...], preferred_element_type=jnp.float32)

    @pl.when(pl.program_id(2) == 0)
    def _():
        acc_ref[...] = part          # first K step writes directly (no zero-fill RMW)

    @pl.when(pl.program_id(2) != 0)
    def _():
        acc_ref[...] += part

    @pl.when(pl.program_id(2) == pl.num_programs(2) - 1)
    def _():
        out = acc_ref[...] + b_ref[...]
        if relu:
            out = jnp.maximum(out, 0.0)
        o_ref[...] = out.astype(o_ref.dtype)


def _mm_bias_res_ktiled_kernel(x_ref, w_ref, b_ref, r_ref, o_ref, acc_ref, *, relu):
    part = jnp.dot(x_ref[...], w_ref[...], preferred_element_type=jnp.float32)

    @pl.when(pl.program_id(2) == 0)
    def _():
        acc_ref[...] = part

    @pl.when(pl.program_id(2) != 0)
    def _():
        acc_ref[...] += part

    @pl.when(pl.program_id(2) == pl.num_programs(2) - 1)
    def _():
        out = acc_ref[...] + b_ref[...] + r_ref[...].astype(jnp.float32)
        if relu:
            out = jnp.maximum(out, 0.0)
        o_ref[...] = out.astype(o_ref.dtype)


def _conv3x3s1_kernel(*refs, cs, wp, lw, relu, has_res):
    # x_ref: (Lp, Cs)  spatially padded image flattened to rows (no im2col in HBM)
    # w_ref: (9*Cs, tn) tap-major folded weights; o/r_ref: (Lw, tn) "wide" rows
    # (Wp columns per output row; the first W columns are the valid conv output).
    if has_res:
        x_ref, w_ref, b_ref, r_ref, o_ref = refs
    else:
        x_ref, w_ref, b_ref, o_ref = refs
    acc = jnp.dot(x_ref[0:lw, :], w_ref[0:cs, :],
                  preferred_element_type=jnp.float32)
    for t in range(1, 9):
        di, dj = divmod(t, 3)
        off = di * wp + dj
        acc = acc + jnp.dot(x_ref[off:off + lw, :],
                            w_ref[t * cs:(t + 1) * cs, :],
                            preferred_element_type=jnp.float32)
    out = acc + b_ref[...]
    if has_res:
        out = out + r_ref[...].astype(jnp.float32)
    if relu:
        out = jnp.maximum(out, 0.0)
    o_ref[...] = out.astype(o_ref.dtype)


def _fuse_sum_kernel(*refs, n, relu):
    o_ref = refs[n]
    acc = refs[0][...].astype(jnp.float32)
    for idx in range(1, n):
        acc = acc + refs[idx][...].astype(jnp.float32)
    if relu:
        acc = jnp.maximum(acc, 0.0)
    o_ref[...] = acc.astype(o_ref.dtype)


# ----------------------------- Pallas wrappers -----------------------------

def _matmul_bias_act(x2d, w2d, bias, residual, relu):
    """(M,K)bf16 @ (K_pad,N_pad)bf16 + bias_f32 [+ res] [-> relu] -> (M,N_pad) bf16."""
    M, K = x2d.shape
    K_pad, N_pad = w2d.shape

    M16 = _round_up(M, _SUBLANE_BF16)
    tm = min(M16, _MAX_TM)
    M_pad = _round_up(M16, tm)
    grid_i = M_pad // tm
    tn = _choose_tn(N_pad)
    # Expose >=2 parallel grid tiles when possible (v7x megacore sharding).
    if grid_i == 1 and N_pad // tn < 2 and N_pad >= 2 * _LANE:
        tn = N_pad // 2 if (N_pad // 2) % _LANE == 0 else _LANE
    grid_j = N_pad // tn
    tk = _choose_tk(K_pad, tm, tn)
    nk = K_pad // tk

    xp = x2d
    if (M_pad, K_pad) != (M, K):
        xp = jnp.pad(x2d, ((0, M_pad - M), (0, K_pad - K)))
    rp = residual
    if rp is not None and rp.shape != (M_pad, N_pad):
        rp = jnp.pad(rp, ((0, M_pad - rp.shape[0]), (0, N_pad - rp.shape[1])))

    cost = pl.CostEstimate(
        flops=2 * M_pad * K_pad * N_pad,
        transcendentals=0,
        bytes_accessed=2 * (xp.size + w2d.size + M_pad * N_pad
                            + (rp.size if rp is not None else 0)) + 4 * bias.size)

    if nk == 1:
        in_specs = [
            pl.BlockSpec((tm, K_pad), lambda i, j: (i, 0)),
            pl.BlockSpec((K_pad, tn), lambda i, j: (0, j)),
            pl.BlockSpec((1, tn), lambda i, j: (0, j)),
        ]
        args = [xp, w2d, bias]
        if rp is not None:
            in_specs.append(pl.BlockSpec((tm, tn), lambda i, j: (i, j)))
            args.append(rp)
            kernel = functools.partial(_mm_bias_res_kernel, relu=relu)
        else:
            kernel = functools.partial(_mm_bias_kernel, relu=relu)
        out = pl.pallas_call(
            kernel,
            out_shape=jax.ShapeDtypeStruct((M_pad, N_pad), jnp.bfloat16),
            grid=(grid_i, grid_j),
            in_specs=in_specs,
            out_specs=pl.BlockSpec((tm, tn), lambda i, j: (i, j)),
            compiler_params=pltpu.CompilerParams(
                dimension_semantics=("parallel", "parallel"),
                vmem_limit_bytes=_VMEM_LIMIT),
            cost_estimate=cost,
        )(*args)
    else:
        in_specs = [
            pl.BlockSpec((tm, tk), lambda i, j, k: (i, k)),
            pl.BlockSpec((tk, tn), lambda i, j, k: (k, j)),
            pl.BlockSpec((1, tn), lambda i, j, k: (0, j)),
        ]
        args = [xp, w2d, bias]
        if rp is not None:
            in_specs.append(pl.BlockSpec((tm, tn), lambda i, j, k: (i, j)))
            args.append(rp)
            kernel = functools.partial(_mm_bias_res_ktiled_kernel, relu=relu)
        else:
            kernel = functools.partial(_mm_bias_ktiled_kernel, relu=relu)
        out = pl.pallas_call(
            kernel,
            out_shape=jax.ShapeDtypeStruct((M_pad, N_pad), jnp.bfloat16),
            grid=(grid_i, grid_j, nk),
            in_specs=in_specs,
            out_specs=pl.BlockSpec((tm, tn), lambda i, j, k: (i, j)),
            scratch_shapes=[pltpu.VMEM((tm, tn), jnp.float32)],
            compiler_params=pltpu.CompilerParams(
                dimension_semantics=("parallel", "parallel", "arbitrary"),
                vmem_limit_bytes=_VMEM_LIMIT),
            cost_estimate=cost,
        )(*args)

    if M_pad != M:
        out = out[:M, :]
    return out


@functools.partial(jax.jit, static_argnames=("relu", "has_res", "tn"))
def _conv3x3s1_jit(x, w, bias, residual, *, relu, has_res, tn):
    """Fused 3x3 / stride-1 conv: no im2col in HBM.  The spatially padded NHWC
    image is DMA'd once per (image, cout-tile); the 9 taps are in-kernel
    row-offset slices accumulated on the MXU ("wide rows": all W+2 columns per
    output row are computed, the 2 pad columns are discarded afterwards)."""
    n, h, wdt, cs = x.shape
    wp = wdt + 2
    lp = (h + 3) * wp            # top pad + bottom pad + one safety row
    lw = h * wp
    npad = w.shape[1]

    xf = jnp.pad(x, ((0, 0), (1, 2), (1, 1), (0, 0))).reshape(n, lp, cs)
    args = [xf, w, bias]
    in_specs = [
        pl.BlockSpec((None, lp, cs), lambda b, j: (b, 0, 0)),
        pl.BlockSpec((9 * cs, tn), lambda b, j: (0, j)),
        pl.BlockSpec((1, tn), lambda b, j: (0, j)),
    ]
    res_bytes = 0
    if has_res:
        rf = jnp.pad(residual, ((0, 0), (0, 0), (0, wp - wdt), (0, 0))).reshape(n, lw, npad)
        args.append(rf)
        in_specs.append(pl.BlockSpec((None, lw, tn), lambda b, j: (b, 0, j)))
        res_bytes = 2 * rf.size

    kernel = functools.partial(_conv3x3s1_kernel, cs=cs, wp=wp, lw=lw,
                               relu=relu, has_res=has_res)
    cost = pl.CostEstimate(
        flops=2 * n * lw * 9 * cs * npad,
        transcendentals=0,
        bytes_accessed=2 * (xf.size + w.size + n * lw * npad) + res_bytes + 4 * bias.size)

    out = pl.pallas_call(
        kernel,
        out_shape=jax.ShapeDtypeStruct((n, lw, npad), jnp.bfloat16),
        grid=(n, npad // tn),
        in_specs=in_specs,
        out_specs=pl.BlockSpec((None, lw, tn), lambda b, j: (b, 0, j)),
        compiler_params=pltpu.CompilerParams(
            dimension_semantics=("parallel", "parallel"),
            vmem_limit_bytes=_VMEM_LIMIT),
        cost_estimate=cost,
    )(*args)
    return out.reshape(n, h, wp, npad)[:, :, :wdt, :]


_FUSED_STATE = {"ok": None}


def _fused_conv_available():
    """Probe-compile the fused 3x3 kernel once; fall back to im2col if it fails."""
    if _FUSED_STATE["ok"] is None:
        try:
            n, h, w, cs, npad = 1, 4, 5, 128, 128
            x = jnp.zeros((n, h, w, cs), jnp.bfloat16)
            wt = jnp.zeros((9 * cs, npad), jnp.bfloat16)
            b = jnp.zeros((1, npad), jnp.float32)
            r = jnp.zeros((n, h, w, npad), jnp.bfloat16)
            jax.block_until_ready(
                _conv3x3s1_jit(x, wt, b, None, relu=True, has_res=False, tn=128))
            jax.block_until_ready(
                _conv3x3s1_jit(x, wt, b, r, relu=True, has_res=True, tn=128))
            _FUSED_STATE["ok"] = True
        except Exception:
            _FUSED_STATE["ok"] = False
    return _FUSED_STATE["ok"]


@functools.partial(jax.jit, static_argnames=("stride", "padding", "k", "relu", "has_res"))
def _conv_generic_jit(x, w, bias, residual, *, stride, padding, k, relu, has_res):
    """Fallback path (1x1 convs and 3x3 stride-2 convs): XLA im2col + Pallas matmul."""
    N, H, W, C = x.shape
    Ho = (H + 2 * padding - k) // stride + 1
    Wo = (W + 2 * padding - k) // stride + 1
    if k == 1 and stride == 1:
        cols = x.reshape(N * H * W, C)
    else:
        xp = jnp.pad(x, ((0, 0), (padding, padding), (padding, padding), (0, 0)))
        patches = []
        for di in range(k):
            for dj in range(k):
                patches.append(jax.lax.slice(
                    xp,
                    (0, di, dj, 0),
                    (N, di + (Ho - 1) * stride + 1, dj + (Wo - 1) * stride + 1, C),
                    (1, stride, stride, 1)))
        cols = jnp.concatenate(patches, axis=-1).reshape(N * Ho * Wo, k * k * C)
    npad = w.shape[1]
    r2d = residual.reshape(N * Ho * Wo, npad) if has_res else None
    out2d = _matmul_bias_act(cols, w, bias, r2d, relu)
    return out2d.reshape(N, Ho, Wo, npad)


@functools.partial(jax.jit, static_argnames=("relu",))
def _fuse_sum_call(flat, *, relu):
    n_in = len(flat)
    M, C = flat[0].shape            # C already lane-padded (stored layout)
    M16 = _round_up(M, _SUBLANE_BF16)
    tm = min(M16, _MAX_TM)
    M_pad = _round_up(M16, tm)

    padded = []
    for t in flat:
        if t.shape[0] != M_pad:
            t = jnp.pad(t, ((0, M_pad - M), (0, 0)))
        padded.append(t)

    kernel = functools.partial(_fuse_sum_kernel, n=n_in, relu=relu)
    out = pl.pallas_call(
        kernel,
        out_shape=jax.ShapeDtypeStruct((M_pad, C), jnp.bfloat16),
        grid=(M_pad // tm,),
        in_specs=[pl.BlockSpec((tm, C), lambda i: (i, 0))] * n_in,
        out_specs=pl.BlockSpec((tm, C), lambda i: (i, 0)),
        compiler_params=pltpu.CompilerParams(
            dimension_semantics=("parallel",),
            vmem_limit_bytes=_VMEM_LIMIT),
    )(*padded)
    if M_pad != M:
        out = out[:M, :]
    return out


def _fuse_add(tensors, relu):
    n, h, w, c = tensors[0].shape
    flat = [t.reshape(n * h * w, c) for t in tensors]
    return _fuse_sum_call(flat, relu=relu).reshape(n, h, w, c)


@functools.partial(jax.jit, static_argnames=("widths", "factors"))
def _grouped_up_jit(x, wg, bg, *, widths, factors):
    """All fuse-'up' 1x1 convs sharing this source branch as ONE matmul, then
    per-target column split + nearest upsample."""
    # TODO(synk): fold the nearest-neighbour upsample into the fuse-sum kernel
    # (index_map h//factor) instead of materializing jnp.repeat here.
    n, h, w, cs = x.shape
    out = _matmul_bias_act(x.reshape(n * h * w, cs), wg, bg, None, relu=False)
    res = []
    off = 0
    for wd, f in zip(widths, factors):
        t = out[:, off:off + wd].reshape(n, h, w, wd)
        if f > 1:
            t = jnp.repeat(jnp.repeat(t, f, axis=1), f, axis=2)
        res.append(t)
        off += wd
    return tuple(res)


# ----------------------------- parameters -----------------------------

class ParamGen:
    """Deterministic synthetic parameters (He-style conv init, tame BN stats)."""
    # TODO(synk): pretrained checkpoint loading is not applicable; params are synthetic.

    def __init__(self, key):
        self.key = key
        self.i = 0

    def _next(self):
        k = jax.random.fold_in(self.key, self.i)
        self.i += 1
        return k

    def conv(self, cin, cout, k):
        fan_in = cin * k * k
        std = (2.0 / fan_in) ** 0.5
        return std * jax.random.normal(self._next(), (k * k * cin, cout), jnp.float32)

    def bn(self, c):
        gamma = 0.2 * (1.0 + 0.05 * jax.random.normal(self._next(), (c,), jnp.float32))
        beta = 0.05 * jax.random.normal(self._next(), (c,), jnp.float32)
        mean = 0.05 * jax.random.normal(self._next(), (c,), jnp.float32)
        var = 1.0 + 0.1 * jax.random.uniform(self._next(), (c,), jnp.float32)
        return gamma, beta, mean, var

    def bias(self, c):
        return 0.05 * jax.random.normal(self._next(), (c,), jnp.float32)


# ----------------------------- modules -----------------------------

class ConvBN:
    """Conv(k, stride, pad=(k-1)//2) + BatchNorm folded into (bf16 W, f32 bias).

    Activations are carried channel-padded (stored C = round_up(C, 128)); the
    weight rows for the padded input channels are zero so results match the
    unpadded conv.  ReLU / residual add are fused into the kernel epilogue."""

    def __init__(self, pg, cin, cout, k, stride=1, has_bias=False, cin_stored=None):
        self.k = k
        self.stride = stride
        self.pad = (k - 1) // 2
        self.cout = cout
        self.cs = cin_stored if cin_stored is not None else _round_up(cin, _LANE)
        self.npad = _round_up(cout, _LANE)

        w = pg.conv(cin, cout, k)
        gamma, beta, mean, var = pg.bn(cout)
        scale = gamma / jnp.sqrt(var + 1e-5)
        bias = beta - mean * scale
        if has_bias:
            bias = bias + pg.bias(cout) * scale
        # NOTE: folding the BN scale into bf16 weights trades a little accuracy
        # (vs an fp32 conv+BN reference) for halved weight HBM traffic.
        w_fold = (w * scale[None, :]).reshape(k, k, cin, cout)
        if self.cs != cin:
            w_fold = jnp.pad(w_fold, ((0, 0), (0, 0), (0, self.cs - cin), (0, 0)))
        K = k * k * self.cs
        K_pad = _round_up(K, _LANE)
        w2 = w_fold.reshape(K, cout)
        self.w = jnp.pad(w2, ((0, K_pad - K), (0, self.npad - cout))).astype(jnp.bfloat16)
        self.bias = jnp.pad(bias.reshape(1, -1), ((0, 0), (0, self.npad - cout)))

        # cout-tile for the fused 3x3/s1 kernel, sized to the per-buffer weight budget.
        self._fused_tn = None
        if k == 3 and stride == 1 and self.cs % _LANE == 0:
            for cand in (512, 384, 256, 128):
                if self.npad % cand == 0 and 9 * self.cs * cand * 2 <= _FUSED_W_BUDGET:
                    self._fused_tn = cand
                    break

    def _use_fused(self, shape):
        if self._fused_tn is None or not _fused_conv_available():
            return False
        n, h, w, cs = shape
        lp = (h + 3) * (w + 2)
        lw = h * (w + 2)
        need = 4 * (lp * cs + 9 * cs * self._fused_tn + 2 * lw * self._fused_tn)
        return need <= _VMEM_LIMIT // 2

    def __call__(self, x, relu, residual=None):
        if self.k == 3 and self.stride == 1 and self._use_fused(x.shape):
            return _conv3x3s1_jit(x, self.w, self.bias, residual,
                                  relu=relu, has_res=residual is not None,
                                  tn=self._fused_tn)
        return _conv_generic_jit(x, self.w, self.bias, residual,
                                 stride=self.stride, padding=self.pad, k=self.k,
                                 relu=relu, has_res=residual is not None)


class GroupedUp1x1:
    """All 1x1 (conv+BN) fuse-up projections sharing the same source branch,
    concatenated along the output-channel dim into a single folded weight."""

    def __init__(self, pg, cin, couts):
        cs = _round_up(cin, _LANE)
        ws, bs, widths = [], [], []
        for cout in couts:
            npad = _round_up(cout, _LANE)
            w = pg.conv(cin, cout, 1)
            gamma, beta, mean, var = pg.bn(cout)
            scale = gamma / jnp.sqrt(var + 1e-5)
            bias = beta - mean * scale
            wf = jnp.pad(w * scale[None, :], ((0, cs - cin), (0, npad - cout)))
            ws.append(wf)
            bs.append(jnp.pad(bias.reshape(1, -1), ((0, 0), (0, npad - cout))))
            widths.append(npad)
        self.w = jnp.concatenate(ws, axis=1).astype(jnp.bfloat16)
        self.bias = jnp.concatenate(bs, axis=1)
        self.widths = tuple(widths)


class BasicBlock:
    expansion = 1

    def __init__(self, pg, inplanes, planes, stride=1, downsample=None):
        self.conv1 = ConvBN(pg, inplanes, planes, 3, stride)
        self.conv2 = ConvBN(pg, planes, planes, 3, 1)
        self.downsample = downsample

    def __call__(self, x):
        residual = x if self.downsample is None else self.downsample(x, relu=False)
        out = self.conv1(x, relu=True)
        return self.conv2(out, relu=True, residual=residual)   # add + relu fused


class Bottleneck:
    expansion = 4

    def __init__(self, pg, inplanes, planes, stride=1, downsample=None):
        self.conv1 = ConvBN(pg, inplanes, planes, 1, 1)
        self.conv2 = ConvBN(pg, planes, planes, 3, stride)
        self.conv3 = ConvBN(pg, planes, planes * self.expansion, 1, 1)
        self.downsample = downsample

    def __call__(self, x):
        residual = x if self.downsample is None else self.downsample(x, relu=False)
        out = self.conv1(x, relu=True)
        out = self.conv2(out, relu=True)
        return self.conv3(out, relu=True, residual=residual)   # add + relu fused


def _make_layer(pg, block_cls, inplanes, planes, blocks, stride=1):
    downsample = None
    if stride != 1 or inplanes != planes * block_cls.expansion:
        downsample = ConvBN(pg, inplanes, planes * block_cls.expansion, 1, stride)
    layers = [block_cls(pg, inplanes, planes, stride, downsample)]
    inplanes = planes * block_cls.expansion
    for _ in range(1, blocks):
        layers.append(block_cls(pg, inplanes, planes))
    return layers


def _seq(layers, x):
    for layer in layers:
        x = layer(x)
    return x


def _make_transition(pg, prev_ch, cur_ch):
    trans = []
    for i, c in enumerate(cur_ch):
        if i < len(prev_ch):
            if c != prev_ch[i]:
                trans.append(("conv", ConvBN(pg, prev_ch[i], c, 3, 1)))
            else:
                trans.append(("id", None))
        else:
            convs = []
            cin = prev_ch[-1]
            for j in range(i + 1 - len(prev_ch)):
                cout = c if j == i - len(prev_ch) else cin
                convs.append(ConvBN(pg, cin, cout, 3, 2))
                cin = cout
            trans.append(("downchain", convs))
    return trans


def _apply_transition_entry(entry, x):
    kind = entry[0]
    if kind == "id":
        return x
    if kind == "conv":
        return entry[1](x, relu=True)
    out = x
    for cv in entry[1]:
        out = cv(out, relu=True)
    return out


class HRModule:
    """HighResolutionModule (BASIC blocks, SUM fusion, multi_scale_output=True)."""

    def __init__(self, pg, num_branches, num_blocks, num_channels):
        self.nb = num_branches
        self.branches = [
            _make_layer(pg, BasicBlock, num_channels[i], num_channels[i], num_blocks[i])
            for i in range(num_branches)]
        # Fuse layers: "up" 1x1 convs grouped per source branch (one matmul each),
        # identity on the diagonal, 3x3/stride-2 chains for downsampling.
        self.up_groups = {
            j: GroupedUp1x1(pg, num_channels[j], [num_channels[i] for i in range(j)])
            for j in range(1, num_branches)}
        self.down = {}
        for i in range(num_branches):
            for j in range(i):
                convs = []
                for k in range(i - j):
                    cout = num_channels[i] if k == i - j - 1 else num_channels[j]
                    convs.append(ConvBN(pg, num_channels[j], cout, 3, 2))
                self.down[(i, j)] = convs

    def __call__(self, xs):
        xs = [_seq(self.branches[i], xs[i]) for i in range(self.nb)]
        ups = {}
        for j in range(1, self.nb):
            grp = self.up_groups[j]
            factors = tuple(2 ** (j - i) for i in range(j))
            ups[j] = list(_grouped_up_jit(xs[j], grp.w, grp.bias,
                                          widths=grp.widths, factors=factors))
        outs = []
        for i in range(self.nb):
            terms = []
            for j in range(self.nb):
                if j == i:
                    terms.append(xs[i])
                elif j > i:
                    terms.append(ups[j][i])
                else:
                    t = xs[j]
                    convs = self.down[(i, j)]
                    for k, cv in enumerate(convs):
                        t = cv(t, relu=(k < len(convs) - 1))
                    terms.append(t)
            outs.append(_fuse_add(terms, relu=True))
        return outs


class HRNetW64Features:
    """Equivalent of timm.hrnet_w64().forward_features (classification head variant)."""

    def __init__(self, key):
        pg = ParamGen(key)
        # stem (input image is NOT channel-padded; cin_stored=3)
        self.conv1 = ConvBN(pg, 3, 64, 3, 2, cin_stored=3)
        self.conv2 = ConvBN(pg, 64, 64, 3, 2)
        # stage 1: 4 Bottlenecks, 64 planes
        self.layer1 = _make_layer(pg, Bottleneck, 64, 64, 4)
        stage1_out = 64 * Bottleneck.expansion  # 256
        # stage 2
        c2 = (64, 128)
        self.transition1 = _make_transition(pg, (stage1_out,), c2)
        self.stage2 = [HRModule(pg, 2, (4, 4), c2) for _ in range(1)]
        # stage 3
        c3 = (64, 128, 256)
        self.transition2 = _make_transition(pg, c2, c3)
        self.stage3 = [HRModule(pg, 3, (4, 4, 4), c3) for _ in range(4)]
        # stage 4
        c4 = (64, 128, 256, 512)
        self.transition3 = _make_transition(pg, c3, c4)
        self.stage4 = [HRModule(pg, 4, (4, 4, 4, 4), c4) for _ in range(3)]
        # classification head
        head_ch = (32, 64, 128, 256)
        self.incre = [_make_layer(pg, Bottleneck, c4[i], head_ch[i], 1) for i in range(4)]
        self.downsamp = [ConvBN(pg, head_ch[i] * 4, head_ch[i + 1] * 4, 3, 2, has_bias=True)
                         for i in range(3)]
        self.final = ConvBN(pg, head_ch[3] * 4, 2048, 1, 1, has_bias=True)

    def forward_features(self, x_nchw):
        # NCHW f32 -> NHWC bf16 (channel-padded layout is introduced by the stem convs)
        x = jnp.transpose(x_nchw.astype(jnp.float32), (0, 2, 3, 1)).astype(jnp.bfloat16)
        # stem
        x = self.conv1(x, relu=True)
        x = self.conv2(x, relu=True)
        # stages
        x = _seq(self.layer1, x)

        yl = [_apply_transition_entry(t, x) for t in self.transition1]
        for m in self.stage2:
            yl = m(yl)

        yl = [yl[i] if t[0] == "id" else _apply_transition_entry(t, yl[-1])
              for i, t in enumerate(self.transition2)]
        for m in self.stage3:
            yl = m(yl)

        yl = [yl[i] if t[0] == "id" else _apply_transition_entry(t, yl[-1])
              for i, t in enumerate(self.transition3)]
        for m in self.stage4:
            yl = m(yl)

        # classification head: y = incre[i](yl[i]) + downsamp[i-1](y); then final_layer
        y = _seq(self.incre[0], yl[0])
        for i in range(1, 4):
            yi = _seq(self.incre[i], yl[i])
            yd = self.downsamp[i - 1](y, relu=True)
            y = _fuse_add([yi, yd], relu=False)
        y = self.final(y, relu=True)
        y = y[..., :2048]
        return jnp.transpose(y, (0, 3, 1, 2)).astype(jnp.float32)  # NHWC -> NCHW


# ----------------------------- main -----------------------------

if __name__ == "__main__":
    root = jax.random.PRNGKey(0)
    model = HRNetW64Features(jax.random.fold_in(root, 1))

    # Small input consistent with the module (ImageNet-style 3 channels, /32 net stride).
    x = jax.random.normal(jax.random.fold_in(root, 0), (2, 3, 64, 64), jnp.float32)

    y = model.forward_features(x)
    y = jax.block_until_ready(y)

    assert y.shape == (2, 2048, 2, 2), y.shape           # (B, 2048, H/32, W/32)
    assert bool(jnp.all(jnp.isfinite(y)))
    print("KERNEL_OK")
</pallas_src>

<mosaic_0001>
module attributes {stable_mosaic.version = 11 : i64} {
  func.func @_mm_bias_kernel(%arg0: i32, %arg1: i32, %arg2: memref<512x128xbf16, #tpu.memory_space<vmem>>, %arg3: memref<128x128xbf16, #tpu.memory_space<vmem>>, %arg4: memref<1x128xf32, #tpu.memory_space<vmem>>, %arg5: memref<512x128xbf16, #tpu.memory_space<vmem>>) attributes {dimension_semantics = [#tpu.dimension_semantics<parallel>, #tpu.dimension_semantics<parallel>], iteration_bounds = array<i64: 4, 1>, scalar_prefetch = 0 : i64, scratch_operands = 0 : i64, tpu.core_type = #tpu.core_type<tc>, window_params = [{transform_indices = @transform_0, window_bounds = array<i64: 512, 128>}, {transform_indices = @transform_1, window_bounds = array<i64: 128, 128>}, {transform_indices = @transform_2, window_bounds = array<i64: 1, 128>}, {transform_indices = @transform_3, window_bounds = array<i64: 512, 128>}]} {
    %c0 = arith.constant 0 : index
    %c0_0 = arith.constant 0 : index
    %0 = vector.load %arg2[%c0, %c0_0] : memref<512x128xbf16, #tpu.memory_space<vmem>>, vector<512x128xbf16>
    %c0_1 = arith.constant 0 : index
    %c0_2 = arith.constant 0 : index
    %1 = vector.load %arg3[%c0_1, %c0_2] : memref<128x128xbf16, #tpu.memory_space<vmem>>, vector<128x128xbf16>
    %cst = arith.constant dense<0.000000e+00> : vector<512x128xf32>
    %2 = tpu.matmul %0, %1, %cst {dimension_numbers = #tpu.dot_dimension_numbers<[1], [0], [0], [1], [0, 0, 1, 1], [], []>} : vector<512x128xbf16>, vector<128x128xbf16>, vector<512x128xf32> -> vector<512x128xf32>
    %c0_3 = arith.constant 0 : index
    %c0_4 = arith.constant 0 : index
    %3 = vector.load %arg4[%c0_3, %c0_4] : memref<1x128xf32, #tpu.memory_space<vmem>>, vector<1x128xf32>
    %4 = vector.broadcast %3 : vector<1x128xf32> to vector<512x128xf32>
    %5 = arith.addf %2, %4 : vector<512x128xf32>
    %cst_5 = arith.constant 0.000000e+00 : f32
    %6 = vector.broadcast %cst_5 : f32 to vector<512x128xf32>
    %7 = arith.maximumf %5, %6 : vector<512x128xf32>
    %8 = arith.truncf %7 : vector<512x128xf32> to vector<512x128xbf16>
    %c0_6 = arith.constant 0 : index
    %c0_7 = arith.constant 0 : index
    %9 = vector.load %arg5[%c0_6, %c0_7] : memref<512x128xbf16, #tpu.memory_space<vmem>>, vector<512x128xbf16>
    tpu.vector_store %arg5[%c0_6, %c0_7], %8 {strides = array<i32>} : memref<512x128xbf16, #tpu.memory_space<vmem>>, vector<512x128xbf16>,
    return
  }
  func.func @transform_0(%arg0: i32, %arg1: i32) -> (i32, i32) {
    %c0_i32 = arith.constant 0 : i32
    %c0_i32_0 = arith.constant 0 : i32
    return %arg0, %c0_i32 : i32, i32
  }
  func.func @transform_1(%arg0: i32, %arg1: i32) -> (i32, i32) {
    %c0_i32 = arith.constant 0 : i32
    %c0_i32_0 = arith.constant 0 : i32
    return %c0_i32, %arg1 : i32, i32
  }
  func.func @transform_2(%arg0: i32, %arg1: i32) -> (i32, i32) {
    %c0_i32 = arith.constant 0 : i32
    %c0_i32_0 = arith.constant 0 : i32
    return %c0_i32, %arg1 : i32, i32
  }
  func.func @transform_3(%arg0: i32, %arg1: i32) -> (i32, i32) {
    %c0_i32 = arith.constant 0 : i32
    return %arg0, %arg1 : i32, i32
  }
}

</mosaic_0001>

<llo_original>
// kernel: _conv_generic_jit.1
$region0: #{_conv_generic_jit.1}
  #allocation0 [shape = 'u32[]', space=smem, size = 0x4, offset = 0x4, fixed_abs, tag = 'smem constant byte address 0x4 - core index']
  #allocation1 [shape = 'u32[144,128]{1,0:T(1,128)}', space=vmem, size = 0x12000, scoped, tag = 'internal scratch']
  %s0 = inlined_call_operand.vmem [shape: bf16[2048,128], index: 0, kind: input, shape index: {}]
  %s1 = inlined_call_operand.vmem [shape: bf16[128,128], index: 1, kind: input, shape index: {}]
  %s2 = inlined_call_operand.vmem [shape: f32[1,128], index: 2, kind: input, shape index: {}]
  %s3 = inlined_call_operand.hbm [shape: bf16[2048,128], index: 3, kind: output, shape index: {}]
  %s4 = sld [smem:[#allocation0]]
  $region45: #{_conv_generic_jit.1} parent=0
    _
  %s6 = ssub.s32 1, %s4
  %s7 = scalar_select 0, %s6, %s4
  $region1: #{_conv_generic_jit.1} parent=0
    #allocation2 [shape = 'u8[262144]{0}', space=vmem, size = 0x40000, scoped, tag = 'output window, operand 0']
    #allocation3 [shape = 's32[2]{0}', space=sflag, size = 0x8, scoped, tag = 'scoped memory for _conv_generic_jit.1']
    %8 = vsyncpa [#allocation3], 0
    %s9 = scalar_lea.sflag [#allocation3], 1
    %10 = vsyncpa %s9, 0
    loop: start=0, step=1, limit=6
    $region2: #{_conv_generic_jit.1} parent=1 // loop_pre_header
      _
    $region3: #{_conv_generic_jit.1} parent=1 // loop_header
      %s12 = sphi 0, %s16
      %p13 = scmp.ge.s32.totalorder %s12, 6
      %s19 = sphi 0, %s31
      %s20 = sphi 0, %s27
      %s21 = sphi 0, %s19
      %s22 = sphi 0, %s20
      %s23 = sphi 0, %s21
      %s24 = sphi 0, %s22
      %s34 = sphi 0, %s36
      %s37 = sphi 0, %s34
      %s38 = sphi 0, %s37
      %s54 = sphi 0, %s38
      %s60 = sphi 0, %s62
      %s63 = sphi 0, %s60
      %s64 = sphi 0, %s63
      %s80 = sphi 0, %s64
      %s86 = sphi 0, %s88
      %s89 = sphi 0, %s86
      %s90 = sphi 0, %s89
      %s106 = sphi 0, %s90
      %s114 = sphi 0, %s116
      %s117 = sphi 0, %s114
      %s118 = sphi 0, %s117
      %s134 = sphi 0, %s118
    $region4: #{_conv_generic_jit.1} parent=1 // loop_header_branch
      %15 = sbr.rel (%p13) target = $region8
    $region5: #{_conv_generic_jit.1} parent=1 // loop_body
      %s17 = ssub.s32 %s12, 1
      %s18 = ssub.s32 %s12, 2
      %s25 = sadd.s32 1, %s20
      %p26 = scmp.ge.s32.totalorder %s25, 1
      %s27 = scalar_select %p26, 0, %s25
      %s28 = sadd.s32 1, %s19
      %s29 = scalar_select %p26, %s28, %s19
      %p30 = scmp.ge.s32.totalorder %s29, 4
      %s31 = scalar_select %p30, 0, %s29
      %s32 = ssub.s32 %s19, %s31
      %p33 = scmp.eq.s32.totalorder %s32, 0
      %s35 = sadd.s32 %s34, 1
      %s36 = scalar_select %p33, %s34, %s35
      %p39 = pneg %p33
      %p40 = scmp.eq.s32.totalorder %s12, 3
      %p41 = por %p39, %p40
      %p42 = scmp.ne.s32.totalorder %s34, %s37
      %p43 = scmp.eq.s32.totalorder %s12, 0
      %p44 = por %p42, %p43
      %p45 = scmp.ne.s32.totalorder %s34, %s37
      %p46 = scmp.eq.s32.totalorder %s17, 3
      %p47 = por %p45, %p46
      %p48 = scmp.ne.s32.totalorder %s37, %s38
      %p49 = scmp.eq.s32.totalorder %s17, 0
      %p50 = por %p48, %p49
      %p51 = scmp.ne.s32.totalorder %s37, %s38
      %p52 = scmp.eq.s32.totalorder %s18, 3
      %p53 = por %p51, %p52
      %p55 = scmp.ne.s32.totalorder %s38, %s54
      %p56 = scmp.eq.s32.totalorder %s18, 0
      %p57 = por %p55, %p56
      %s58 = ssub.s32 %s20, %s27
      %p59 = scmp.eq.s32.totalorder %s58, 0
      %s61 = sadd.s32 %s60, 1
      %s62 = scalar_select %p59, %s60, %s61
      %p65 = pneg %p59
      %p66 = scmp.eq.s32.totalorder %s12, 3
      %p67 = por %p65, %p66
      %p68 = scmp.ne.s32.totalorder %s60, %s63
      %p69 = scmp.eq.s32.totalorder %s12, 0
      %p70 = por %p68, %p69
      %p71 = scmp.ne.s32.totalorder %s60, %s63
      %p72 = scmp.eq.s32.totalorder %s17, 3
      %p73 = por %p71, %p72
      %p74 = scmp.ne.s32.totalorder %s63, %s64
      %p75 = scmp.eq.s32.totalorder %s17, 0
      %p76 = por %p74, %p75
      %p77 = scmp.ne.s32.totalorder %s63, %s64
      %p78 = scmp.eq.s32.totalorder %s18, 3
      %p79 = por %p77, %p78
      %p81 = scmp.ne.s32.totalorder %s64, %s80
      %p82 = scmp.eq.s32.totalorder %s18, 0
      %p83 = por %p81, %p82
      %s84 = ssub.s32 %s20, %s27
      %p85 = scmp.eq.s32.totalorder %s84, 0
      %s87 = sadd.s32 %s86, 1
      %s88 = scalar_select %p85, %s86, %s87
      %p91 = pneg %p85
      %p92 = scmp.eq.s32.totalorder %s12, 3
      %p93 = por %p91, %p92
      %p94 = scmp.ne.s32.totalorder %s86, %s89
      %p95 = scmp.eq.s32.totalorder %s12, 0
      %p96 = por %p94, %p95
      %p97 = scmp.ne.s32.totalorder %s86, %s89
      %p98 = scmp.eq.s32.totalorder %s17, 3
      %p99 = por %p97, %p98
      %p100 = scmp.ne.s32.totalorder %s89, %s90
      %p101 = scmp.eq.s32.totalorder %s17, 0
      %p102 = por %p100, %p101
      %p103 = scmp.ne.s32.totalorder %s89, %s90
      %p104 = scmp.eq.s32.totalorder %s18, 3
      %p105 = por %p103, %p104
      %p107 = scmp.ne.s32.totalorder %s90, %s106
      %p108 = scmp.eq.s32.totalorder %s18, 0
      %p109 = por %p107, %p108
      %s110 = ssub.s32 %s19, %s31
      %s111 = ssub.s32 %s20, %s27
      %s112 = sor.u32 %s110, %s111
      %p113 = scmp.eq.s32.totalorder %s112, 0
      %s115 = sadd.s32 %s114, 1
      %s116 = scalar_select %p113, %s114, %s115
      %p119 = pneg %p113
      %p120 = scmp.eq.s32.totalorder %s12, 3
      %p121 = por %p119, %p120
      %p122 = scmp.ne.s32.totalorder %s114, %s117
      %p123 = scmp.eq.s32.totalorder %s12, 0
      %p124 = por %p122, %p123
      %p125 = scmp.ne.s32.totalorder %s114, %s117
      %p126 = scmp.eq.s32.totalorder %s17, 3
      %p127 = por %p125, %p126
      %p128 = scmp.ne.s32.totalorder %s117, %s118
      %p129 = scmp.eq.s32.totalorder %s17, 0
      %p130 = por %p128, %p129
      %p131 = scmp.ne.s32.totalorder %s117, %s118
      %p132 = scmp.eq.s32.totalorder %s18, 3
      %p133 = por %p131, %p132
      %p135 = scmp.ne.s32.totalorder %s118, %s134
      %p136 = scmp.eq.s32.totalorder %s18, 0
      %p137 = por %p135, %p136
      %p138 = scmp.le.s32.totalorder 1, %s12
      %p139 = scmp.lt.s32.totalorder %s12, 5
      %p140 = pnand %p138, %p139
      %p141 = pneg %p140
      // Predicated region
      $region9: #{_conv_generic_jit.1} parent=5 // pred_check
        _
      $region10: #{_conv_generic_jit.1} parent=5 // pred_check_branch
        %143 = sbr.rel (%p140) target = $region12
      $region11: #{_conv_generic_jit.1} parent=5 // pred_region
        %s144 = ssub.s32 %s12, 1
        // Predicated region
        $region13: #{_conv_generic_jit.1} parent=11 // pred_check
          %p145 = pneg %p76
        $region14: #{_conv_generic_jit.1} parent=11 // pred_check_branch
          %147 = sbr.rel (%p145) target = $region16
        $region15: #{_conv_generic_jit.1} parent=11 // pred_region
          %p148 = scmp.lt.s32.totalorder %s22, 0
          %s149 = scalar_select %p148, %s22, 0
          %s150 = smul.addr %s149, 4
          %s151 = scalar_lea.vmem %s1, %s150
        $region16: #{_conv_generic_jit.1} parent=11 // pred_fallthru
          _
        // Predicated region
        $region17: #{_conv_generic_jit.1} parent=11 // pred_check
          %p152 = pneg %p102
        $region18: #{_conv_generic_jit.1} parent=11 // pred_check_branch
          %154 = sbr.rel (%p152) target = $region20
        $region19: #{_conv_generic_jit.1} parent=11 // pred_region
          %p155 = scmp.lt.s32.totalorder %s22, 0
          %s156 = scalar_select %p155, %s22, 0
          %s157 = scalar_lea.vmem %s2, %s156
        $region20: #{_conv_generic_jit.1} parent=11 // pred_fallthru
          _
      $region12: #{_conv_generic_jit.1} parent=5 // pred_fallthru
        _
      %p158 = scmp.lt.s32.totalorder %s12, 4
      // Predicated region
      $region21: #{_conv_generic_jit.1} parent=5 // pred_check
        %p159 = pneg %p158
      $region22: #{_conv_generic_jit.1} parent=5 // pred_check_branch
        %161 = sbr.rel (%p159) target = $region24
      $region23: #{_conv_generic_jit.1} parent=5 // pred_region
        // Predicated region
        $region25: #{_conv_generic_jit.1} parent=23 // pred_check
          %p162 = pneg %p44
        $region26: #{_conv_generic_jit.1} parent=23 // pred_check_branch
          %164 = sbr.rel (%p162) target = $region28
        $region27: #{_conv_generic_jit.1} parent=23 // pred_region
          %s165 = smul.u32 64, %s19
          %p166 = scmp.lt.s32.totalorder %s165, 255
          %s167 = scalar_select %p166, %s165, 255
          %s168 = smul.addr %s167, 4
          %s169 = scalar_lea.vmem %s0, %s168
          %s170 = smul.u32 64, %s19
        $region28: #{_conv_generic_jit.1} parent=23 // pred_fallthru
          _
      $region24: #{_conv_generic_jit.1} parent=5 // pred_fallthru
        _
      %p171 = scmp.le.s32.totalorder 1, %s12
      %p172 = scmp.lt.s32.totalorder %s12, 5
      %p173 = pnand %p171, %p172
      %p174 = pneg %p173
      // Predicated region
      $region29: #{_conv_generic_jit.1} parent=5 // pred_check
        _
      $region30: #{_conv_generic_jit.1} parent=5 // pred_check_branch
        %176 = sbr.rel (%p173) target = $region32
      $region31: #{_conv_generic_jit.1} parent=5 // pred_region
        %s177 = ssub.s32 %s12, 1
        %s178 = smul.u32 64, %s21
        %p179 = scmp.lt.s32.totalorder %s178, 255
        %s180 = scalar_select %p179, %s178, 255
        %s181 = smul.addr %s180, 4
        %s182 = scalar_lea.vmem %s0, %s181
        %p183 = pneg %p50
        %p184 = pneg %p47
        %p185 = scmp.lt.s32.totalorder %s22, 0
        %s186 = scalar_select %p185, %s22, 0
        %s187 = smul.addr %s186, 4
        %s188 = scalar_lea.vmem %s1, %s187
        %p189 = pneg %p76
        %p190 = pneg %p73
        %p191 = scmp.lt.s32.totalorder %s22, 0
        %s192 = scalar_select %p191, %s22, 0
        %s193 = scalar_lea.vmem %s2, %s192
        %p194 = pneg %p102
        %p195 = pneg %p99
        %p196 = pneg %p130
        %p197 = pneg %p127
        %s198 = sand.u32 %s117, 1
        %s199 = scalar_lea.sflag [#allocation3], %s198
        %s200 = sand.u32 %s117, 1
        %s201 = smul.addr %s200, 256
        %s202 = scalar_lea.vmem [#allocation2], %s201
        %s203 = smul.u32 64, %s21
        %p204 = scmp.lt.s32.totalorder %s203, 255
        %s205 = scalar_select %p204, %s203, 255
        %s206 = smul.addr %s205, 4
        %s207 = scalar_lea.vmem %s0, %s206
        %s208 = smul.u32 64, %s21
        %p209 = scmp.lt.s32.totalorder %s22, 0
        %s210 = scalar_select %p209, %s22, 0
        %s211 = smul.addr %s210, 4
        %s212 = scalar_lea.vmem %s1, %s211
        %p213 = scmp.lt.s32.totalorder %s22, 0
        %s214 = scalar_select %p213, %s22, 0
        %s215 = scalar_lea.vmem %s2, %s214
        %s216 = smul.u32 64, %s21
        %v218 = vld [vmem:[%s207] sm:$0xf]
        %v219 = vld [vmem:[%s207 + $0x4] sm:$0xf]
        %v220 = vld [vmem:[%s207 + $0x8] sm:$0xf]
        %v221 = vld [vmem:[%s207 + $0xc] sm:$0xf]
        %v222 = vld [vmem:[%s207 + $0x10] sm:$0xf]
        %v223 = vld [vmem:[%s207 + $0x14] sm:$0xf]
        %v224 = vld [vmem:[%s207 + $0x18] sm:$0xf]
        %v225 = vld [vmem:[%s207 + $0x1c] sm:$0xf]
        %v226 = vld [vmem:[%s207 + $0x20] sm:$0xf]
        %v227 = vld [vmem:[%s207 + $0x24] sm:$0xf]
        %v228 = vld [vmem:[%s207 + $0x28] sm:$0xf]
        %v229 = vld [vmem:[%s207 + $0x2c] sm:$0xf]
        %v230 = vld [vmem:[%s207 + $0x30] sm:$0xf]
        %v231 = vld [vmem:[%s207 + $0x34] sm:$0xf]
        %v232 = vld [vmem:[%s207 + $0x38] sm:$0xf]
        %v233 = vld [vmem:[%s207 + $0x3c] sm:$0xf]
        %v234 = vld [vmem:[%s207 + $0x40] sm:$0xf]
        %v235 = vld [vmem:[%s207 + $0x44] sm:$0xf]
        %v236 = vld [vmem:[%s207 + $0x48] sm:$0xf]
        %v237 = vld [vmem:[%s207 + $0x4c] sm:$0xf]
        %v238 = vld [vmem:[%s207 + $0x50] sm:$0xf]
        %v239 = vld [vmem:[%s207 + $0x54] sm:$0xf]
        %v240 = vld [vmem:[%s207 + $0x58] sm:$0xf]
        %v241 = vld [vmem:[%s207 + $0x5c] sm:$0xf]
        %v242 = vld [vmem:[%s207 + $0x60] sm:$0xf]
        %v243 = vld [vmem:[%s207 + $0x64] sm:$0xf]
        %v244 = vld [vmem:[%s207 + $0x68] sm:$0xf]
        %v245 = vld [vmem:[%s207 + $0x6c] sm:$0xf]
        %v246 = vld [vmem:[%s207 + $0x70] sm:$0xf]
        %v247 = vld [vmem:[%s207 + $0x74] sm:$0xf]
        %v248 = vld [vmem:[%s207 + $0x78] sm:$0xf]
        %v249 = vld [vmem:[%s207 + $0x7c] sm:$0xf]
        %v250 = vld [vmem:[%s207 + $0x80] sm:$0xf]
        %v251 = vld [vmem:[%s207 + $0x84] sm:$0xf]
        %v252 = vld [vmem:[%s207 + $0x88] sm:$0xf]
        %v253 = vld [vmem:[%s207 + $0x8c] sm:$0xf]
        %v254 = vld [vmem:[%s207 + $0x90] sm:$0xf]
        %v255 = vld [vmem:[%s207 + $0x94] sm:$0xf]
        %v256 = vld [vmem:[%s207 + $0x98] sm:$0xf]
        %v257 = vld [vmem:[%s207 + $0x9c] sm:$0xf]
        %v258 = vld [vmem:[%s207 + $0xa0] sm:$0xf]
        %v259 = vld [vmem:[%s207 + $0xa4] sm:$0xf]
        %v260 = vld [vmem:[%s207 + $0xa8] sm:$0xf]
        %v261 = vld [vmem:[%s207 + $0xac] sm:$0xf]
        %v262 = vld [vmem:[%s207 + $0xb0] sm:$0xf]
        %v263 = vld [vmem:[%s207 + $0xb4] sm:$0xf]
        %v264 = vld [vmem:[%s207 + $0xb8] sm:$0xf]
        %v265 = vld [vmem:[%s207 + $0xbc] sm:$0xf]
        %v266 = vld [vmem:[%s207 + $0xc0] sm:$0xf]
        %v267 = vld [vmem:[%s207 + $0xc4] sm:$0xf]
        %v268 = vld [vmem:[%s207 + $0xc8] sm:$0xf]
        %v269 = vld [vmem:[%s207 + $0xcc] sm:$0xf]
        %v270 = vld [vmem:[%s207 + $0xd0] sm:$0xf]
        %v271 = vld [vmem:[%s207 + $0xd4] sm:$0xf]
        %v272 = vld [vmem:[%s207 + $0xd8] sm:$0xf]
        %v273 = vld [vmem:[%s207 + $0xdc] sm:$0xf]
        %v274 = vld [vmem:[%s207 + $0xe0] sm:$0xf]
        %v275 = vld [vmem:[%s207 + $0xe4] sm:$0xf]
        %v276 = vld [vmem:[%s207 + $0xe8] sm:$0xf]
        %v277 = vld [vmem:[%s207 + $0xec] sm:$0xf]
        %v278 = vld [vmem:[%s207 + $0xf0] sm:$0xf]
        %v279 = vld [vmem:[%s207 + $0xf4] sm:$0xf]
        %v280 = vld [vmem:[%s207 + $0xf8] sm:$0xf]
        %v281 = vld [vmem:[%s207 + $0xfc] sm:$0xf]
        %v282 = vld [vmem:[%s212] sm:$0xf]
        %v283 = vld [vmem:[%s212 + $0x4] sm:$0xf]
        %v284 = vld [vmem:[%s212 + $0x8] sm:$0xf]
        %v285 = vld [vmem:[%s212 + $0xc] sm:$0xf]
        %v286 = vld [vmem:[%s212 + $0x10] sm:$0xf]
        %v287 = vld [vmem:[%s212 + $0x14] sm:$0xf]
        %v288 = vld [vmem:[%s212 + $0x18] sm:$0xf]
        %v289 = vld [vmem:[%s212 + $0x1c] sm:$0xf]
        %v290 = vld [vmem:[%s212 + $0x20] sm:$0xf]
        %v291 = vld [vmem:[%s212 + $0x24] sm:$0xf]
        %v292 = vld [vmem:[%s212 + $0x28] sm:$0xf]
        %v293 = vld [vmem:[%s212 + $0x2c] sm:$0xf]
        %v294 = vld [vmem:[%s212 + $0x30] sm:$0xf]
        %v295 = vld [vmem:[%s212 + $0x34] sm:$0xf]
        %v296 = vld [vmem:[%s212 + $0x38] sm:$0xf]
        %v297 = vld [vmem:[%s212 + $0x3c] sm:$0xf]
        %v298 = vld [vmem:[%s215] sm:$0x1]
        %v300 = vlaneseq
        %v301 = vshrl.u32 %v300, 7
        %v302 = vsub.s32 0, %v301
        %v303 = vrot.slane %v298, %v302
        %v369 = vunpack.c.l.b16 %v218
        %v370 = vunpack.c.l.b16 %v219
        %v371 = vunpack.c.l.b16 %v220
        %v372 = vunpack.c.l.b16 %v221
        %v373 = vunpack.c.l.b16 %v222
        %v374 = vunpack.c.l.b16 %v223
        %v375 = vunpack.c.l.b16 %v224
        %v376 = vunpack.c.l.b16 %v225
        %v377 = vunpack.c.l.b16 %v226
        %v378 = vunpack.c.l.b16 %v227
        %v379 = vunpack.c.l.b16 %v228
        %v380 = vunpack.c.l.b16 %v229
        %v381 = vunpack.c.l.b16 %v230
        %v382 = vunpack.c.l.b16 %v231
        %v383 = vunpack.c.l.b16 %v232
        %v384 = vunpack.c.l.b16 %v233
        %v385 = vunpack.c.l.b16 %v234
        %v386 = vunpack.c.l.b16 %v235
        %v387 = vunpack.c.l.b16 %v236
        %v388 = vunpack.c.l.b16 %v237
        %v389 = vunpack.c.l.b16 %v238
        %v390 = vunpack.c.l.b16 %v239
        %v391 = vunpack.c.l.b16 %v240
        %v392 = vunpack.c.l.b16 %v241
        %v393 = vunpack.c.l.b16 %v242
        %v394 = vunpack.c.l.b16 %v243
        %v395 = vunpack.c.l.b16 %v244
        %v396 = vunpack.c.l.b16 %v245
        %v397 = vunpack.c.l.b16 %v246
        %v398 = vunpack.c.l.b16 %v247
        %v399 = vunpack.c.l.b16 %v248
        %v400 = vunpack.c.l.b16 %v249
        %v401 = vunpack.c.l.b16 %v250
        %v402 = vunpack.c.l.b16 %v251
        %v403 = vunpack.c.l.b16 %v252
        %v404 = vunpack.c.l.b16 %v253
        %v405 = vunpack.c.l.b16 %v254
        %v406 = vunpack.c.l.b16 %v255
        %v407 = vunpack.c.l.b16 %v256
        %v408 = vunpack.c.l.b16 %v257
        %v409 = vunpack.c.l.b16 %v258
        %v410 = vunpack.c.l.b16 %v259
        %v411 = vunpack.c.l.b16 %v260
        %v412 = vunpack.c.l.b16 %v261
        %v413 = vunpack.c.l.b16 %v262
        %v414 = vunpack.c.l.b16 %v263
        %v415 = vunpack.c.l.b16 %v264
        %v416 = vunpack.c.l.b16 %v265
        %v417 = vunpack.c.l.b16 %v266
        %v418 = vunpack.c.l.b16 %v267
        %v419 = vunpack.c.l.b16 %v268
        %v420 = vunpack.c.l.b16 %v269
        %v421 = vunpack.c.l.b16 %v270
        %v422 = vunpack.c.l.b16 %v271
        %v423 = vunpack.c.l.b16 %v272
        %v424 = vunpack.c.l.b16 %v273
        %v425 = vunpack.c.l.b16 %v274
        %v426 = vunpack.c.l.b16 %v275
        %v427 = vunpack.c.l.b16 %v276
        %v428 = vunpack.c.l.b16 %v277
        %v429 = vunpack.c.l.b16 %v278
        %v430 = vunpack.c.l.b16 %v279
        %v431 = vunpack.c.l.b16 %v280
        %v432 = vunpack.c.l.b16 %v281
        %v433 = vpack.c.b16 %v370, %v369
        %v434 = vpack.c.b16 %v372, %v371
        %v435 = vpack.c.b16 %v374, %v373
        %v436 = vpack.c.b16 %v376, %v375
        %v437 = vpack.c.b16 %v378, %v377
        %v438 = vpack.c.b16 %v380, %v379
        %v439 = vpack.c.b16 %v382, %v381
        %v440 = vpack.c.b16 %v384, %v383
        %v441 = vpack.c.b16 %v386, %v385
        %v442 = vpack.c.b16 %v388, %v387
        %v443 = vpack.c.b16 %v390, %v389
        %v444 = vpack.c.b16 %v392, %v391
        %v445 = vpack.c.b16 %v394, %v393
        %v446 = vpack.c.b16 %v396, %v395
        %v447 = vpack.c.b16 %v398, %v397
        %v448 = vpack.c.b16 %v400, %v399
        %v449 = vpack.c.b16 %v402, %v401
        %v450 = vpack.c.b16 %v404, %v403
        %v451 = vpack.c.b16 %v406, %v405
        %v452 = vpack.c.b16 %v408, %v407
        %v453 = vpack.c.b16 %v410, %v409
        %v454 = vpack.c.b16 %v412, %v411
        %v455 = vpack.c.b16 %v414, %v413
        %v456 = vpack.c.b16 %v416, %v415
        %v457 = vpack.c.b16 %v418, %v417
        %v458 = vpack.c.b16 %v420, %v419
        %v459 = vpack.c.b16 %v422, %v421
        %v460 = vpack.c.b16 %v424, %v423
        %v461 = vpack.c.b16 %v426, %v425
        %v462 = vpack.c.b16 %v428, %v427
        %v463 = vpack.c.b16 %v430, %v429
        %v464 = vpack.c.b16 %v432, %v431
        %v513 = vunpack.c.l.b16 %v282
        %v514 = vunpack.c.l.b16 %v283
        %v515 = vunpack.c.l.b16 %v284
        %v516 = vunpack.c.l.b16 %v285
        %v517 = vunpack.c.l.b16 %v286
        %v518 = vunpack.c.l.b16 %v287
        %v519 = vunpack.c.l.b16 %v288
        %v520 = vunpack.c.l.b16 %v289
        %v521 = vunpack.c.l.b16 %v290
        %v522 = vunpack.c.l.b16 %v291
        %v523 = vunpack.c.l.b16 %v292
        %v524 = vunpack.c.l.b16 %v293
        %v525 = vunpack.c.l.b16 %v294
        %v526 = vunpack.c.l.b16 %v295
        %v527 = vunpack.c.l.b16 %v296
        %v528 = vunpack.c.l.b16 %v297
        %v529 = vpack.c.b16 %v514, %v513
        %v530 = vpack.c.b16 %v516, %v515
        %v531 = vpack.c.b16 %v518, %v517
        %v532 = vpack.c.b16 %v520, %v519
        %v533 = vpack.c.b16 %v522, %v521
        %v534 = vpack.c.b16 %v524, %v523
        %v535 = vpack.c.b16 %v526, %v525
        %v536 = vpack.c.b16 %v528, %v527
        %545 = vmatprep.subr.bf16.mxu0 0
        %546 = vmatpush1.bf16.msra.mxu0 %v536
        %547 = vmatprep.subr.bf16.mxu0 0
        %548 = vmatpush1.bf16.msra.mxu0 %v535
        %549 = vmatprep.subr.bf16.mxu0 0
        %550 = vmatpush1.bf16.msra.mxu0 %v534
        %551 = vmatprep.subr.bf16.mxu0 0
        %552 = vmatpush1.bf16.msra.mxu0 %v533
        %553 = vmatprep.subr.bf16.mxu0 0
        %554 = vmatpush1.bf16.msra.mxu0 %v532
        %555 = vmatprep.subr.bf16.mxu0 0
        %556 = vmatpush1.bf16.msra.mxu0 %v531
        %557 = vmatprep.subr.bf16.mxu0 0
        %558 = vmatpush1.bf16.msra.mxu0 %v530
        %559 = vmatprep.subr.bf16.mxu0 0
        %560 = vmatpush1.bf16.msra.mxu0 %v529
        %561 = vmatprep.subr.bf16.mxu0 0
        %562 = vmatpush2.bf16.msra.mxu0 0
        %563 = vmatprep.subr.bf16.mxu0 0
        %564 = vmatpush2.bf16.msra.mxu0 0
        %565 = vmatprep.subr.bf16.mxu0 0
        %566 = vmatpush2.bf16.msra.mxu0 0
        %567 = vmatprep.subr.bf16.mxu0 0
        %568 = vmatpush2.bf16.msra.mxu0 0
        %569 = vmatprep.subr.bf16.mxu0 0
        %570 = vmatpush2.bf16.msra.mxu0 0
        %571 = vmatprep.subr.bf16.mxu0 0
        %572 = vmatpush2.bf16.msra.mxu0 0
        %573 = vmatprep.subr.bf16.mxu0 0
        %574 = vmatpush2.bf16.msra.mxu0 0
        %575 = vmatprep.subr.bf16.mxu0 0
        %576 = vmatpush2.bf16.msra.mxu0 0
        %577 = vmatprep.mubr.bf16.mxu0 0
        %578 = vmatmul.mubr.bf16.gmra.mxu0 %v433
        %v579 = vpop.f32.mrf.mxu0
        %v580 = vadd.f32 %v303, %v579
        %v581 = vpop.f32.mrf.mxu0
        %v582 = vpop.f32.mrf.mxu0
        %v583 = vadd.f32 %v303, %v582
        %v584 = vpop.f32.mrf.mxu0
        %585 = vmatprep.mubr.bf16.mxu0 0
        %586 = vmatmul.mubr.bf16.gmra.mxu0 %v434
        %v587 = vpop.f32.mrf.mxu0
        %v588 = vadd.f32 %v303, %v587
        %v589 = vpop.f32.mrf.mxu0
        %v590 = vpop.f32.mrf.mxu0
        %v591 = vadd.f32 %v303, %v590
        %v592 = vpop.f32.mrf.mxu0
        %593 = vmatprep.mubr.bf16.mxu0 0
        %594 = vmatmul.mubr.bf16.gmra.mxu0 %v435
        %v595 = vpop.f32.mrf.mxu0
        %v596 = vadd.f32 %v303, %v595
        %v597 = vpop.f32.mrf.mxu0
        %v598 = vpop.f32.mrf.mxu0
        %v599 = vadd.f32 %v303, %v598
        %v600 = vpop.f32.mrf.mxu0
        %601 = vmatprep.mubr.bf16.mxu0 0
        %602 = vmatmul.mubr.bf16.gmra.mxu0 %v436
        %v603 = vpop.f32.mrf.mxu0
        %v604 = vadd.f32 %v303, %v603
        %v605 = vpop.f32.mrf.mxu0
        %v606 = vpop.f32.mrf.mxu0
        %v607 = vadd.f32 %v303, %v606
        %v608 = vpop.f32.mrf.mxu0
        %609 = vmatprep.mubr.bf16.mxu0 0
        %610 = vmatmul.mubr.bf16.gmra.mxu0 %v437
        %v611 = vpop.f32.mrf.mxu0
        %v612 = vadd.f32 %v303, %v611
        %v613 = vpop.f32.mrf.mxu0
        %v614 = vpop.f32.mrf.mxu0
        %v615 = vadd.f32 %v303, %v614
        %v616 = vpop.f32.mrf.mxu0
        %617 = vmatprep.mubr.bf16.mxu0 0
        %618 = vmatmul.mubr.bf16.gmra.mxu0 %v438
        %v619 = vpop.f32.mrf.mxu0
        %v620 = vadd.f32 %v303, %v619
        %v621 = vpop.f32.mrf.mxu0
        %v622 = vpop.f32.mrf.mxu0
        %v623 = vadd.f32 %v303, %v622
        %v624 = vpop.f32.mrf.mxu0
        %625 = vmatprep.mubr.bf16.mxu0 0
        %626 = vmatmul.mubr.bf16.gmra.mxu0 %v439
        %v627 = vpop.f32.mrf.mxu0
        %v628 = vadd.f32 %v303, %v627
        %v629 = vpop.f32.mrf.mxu0
        %v630 = vpop.f32.mrf.mxu0
        %v631 = vadd.f32 %v303, %v630
        %v632 = vpop.f32.mrf.mxu0
        %633 = vmatprep.mubr.bf16.mxu0 0
        %634 = vmatmul.mubr.bf16.gmra.mxu0 %v440
        %v635 = vpop.f32.mrf.mxu0
        %v636 = vadd.f32 %v303, %v635
        %v637 = vpop.f32.mrf.mxu0
        %v638 = vpop.f32.mrf.mxu0
        %v639 = vadd.f32 %v303, %v638
        %v640 = vpop.f32.mrf.mxu0
        %641 = vmatprep.mubr.bf16.mxu0 0
        %642 = vmatmul.mubr.bf16.gmra.mxu0 %v441
        %v643 = vpop.f32.mrf.mxu0
        %v644 = vadd.f32 %v303, %v643
        %v645 = vpop.f32.mrf.mxu0
        %v646 = vpop.f32.mrf.mxu0
        %v647 = vadd.f32 %v303, %v646
        %v648 = vpop.f32.mrf.mxu0
        %649 = vmatprep.mubr.bf16.mxu0 0
        %650 = vmatmul.mubr.bf16.gmra.mxu0 %v442
        %v651 = vpop.f32.mrf.mxu0
        %v652 = vadd.f32 %v303, %v651
        %v653 = vpop.f32.mrf.mxu0
        %v654 = vpop.f32.mrf.mxu0
        %v655 = vadd.f32 %v303, %v654
        %v656 = vpop.f32.mrf.mxu0
        %657 = vmatprep.mubr.bf16.mxu0 0
        %658 = vmatmul.mubr.bf16.gmra.mxu0 %v443
        %v659 = vpop.f32.mrf.mxu0
        %v660 = vadd.f32 %v303, %v659
        %v661 = vpop.f32.mrf.mxu0
        %v662 = vpop.f32.mrf.mxu0
        %v663 = vadd.f32 %v303, %v662
        %v664 = vpop.f32.mrf.mxu0
        %665 = vmatprep.mubr.bf16.mxu0 0
        %666 = vmatmul.mubr.bf16.gmra.mxu0 %v444
        %v667 = vpop.f32.mrf.mxu0
        %v668 = vadd.f32 %v303, %v667
        %v669 = vpop.f32.mrf.mxu0
        %v670 = vpop.f32.mrf.mxu0
        %v671 = vadd.f32 %v303, %v670
        %v672 = vpop.f32.mrf.mxu0
        %673 = vmatprep.mubr.bf16.mxu0 0
        %674 = vmatmul.mubr.bf16.gmra.mxu0 %v445
        %v675 = vpop.f32.mrf.mxu0
        %v676 = vadd.f32 %v303, %v675
        %v677 = vpop.f32.mrf.mxu0
        %v678 = vpop.f32.mrf.mxu0
        %v679 = vadd.f32 %v303, %v678
        %v680 = vpop.f32.mrf.mxu0
        %681 = vmatprep.mubr.bf16.mxu0 0
        %682 = vmatmul.mubr.bf16.gmra.mxu0 %v446
        %v683 = vpop.f32.mrf.mxu0
        %v684 = vadd.f32 %v303, %v683
        %v685 = vpop.f32.mrf.mxu0
        %v686 = vpop.f32.mrf.mxu0
        %v687 = vadd.f32 %v303, %v686
        %v688 = vpop.f32.mrf.mxu0
        %689 = vmatprep.mubr.bf16.mxu0 0
        %690 = vmatmul.mubr.bf16.gmra.mxu0 %v447
        %v691 = vpop.f32.mrf.mxu0
        %v692 = vadd.f32 %v303, %v691
        %v693 = vpop.f32.mrf.mxu0
        %v694 = vpop.f32.mrf.mxu0
        %v695 = vadd.f32 %v303, %v694
        %v696 = vpop.f32.mrf.mxu0
        %697 = vmatprep.mubr.bf16.mxu0 0
        %698 = vmatmul.mubr.bf16.gmra.mxu0 %v448
        %v699 = vpop.f32.mrf.mxu0
        %v700 = vadd.f32 %v303, %v699
        %v701 = vpop.f32.mrf.mxu0
        %v702 = vpop.f32.mrf.mxu0
        %v703 = vadd.f32 %v303, %v702
        %v704 = vpop.f32.mrf.mxu0
        %705 = vmatprep.mubr.bf16.mxu0 0
        %706 = vmatmul.mubr.bf16.gmra.mxu0 %v449
        %v707 = vpop.f32.mrf.mxu0
        %v708 = vadd.f32 %v303, %v707
        %v709 = vpop.f32.mrf.mxu0
        %v710 = vpop.f32.mrf.mxu0
        %v711 = vadd.f32 %v303, %v710
        %v712 = vpop.f32.mrf.mxu0
        %713 = vmatprep.mubr.bf16.mxu0 0
        %714 = vmatmul.mubr.bf16.gmra.mxu0 %v450
        %v715 = vpop.f32.mrf.mxu0
        %v716 = vadd.f32 %v303, %v715
        %v717 = vpop.f32.mrf.mxu0
        %v718 = vpop.f32.mrf.mxu0
        %v719 = vadd.f32 %v303, %v718
        %v720 = vpop.f32.mrf.mxu0
        %721 = vmatprep.mubr.bf16.mxu0 0
        %722 = vmatmul.mubr.bf16.gmra.mxu0 %v451
        %v723 = vpop.f32.mrf.mxu0
        %v724 = vadd.f32 %v303, %v723
        %v725 = vpop.f32.mrf.mxu0
        %v726 = vpop.f32.mrf.mxu0
        %v727 = vadd.f32 %v303, %v726
        %v728 = vpop.f32.mrf.mxu0
        %729 = vmatprep.mubr.bf16.mxu0 0
        %730 = vmatmul.mubr.bf16.gmra.mxu0 %v452
        %v731 = vpop.f32.mrf.mxu0
        %v732 = vadd.f32 %v303, %v731
        %v733 = vpop.f32.mrf.mxu0
        %v734 = vpop.f32.mrf.mxu0
        %v735 = vadd.f32 %v303, %v734
        %v736 = vpop.f32.mrf.mxu0
        %737 = vmatprep.mubr.bf16.mxu0 0
        %738 = vmatmul.mubr.bf16.gmra.mxu0 %v453
        %v739 = vpop.f32.mrf.mxu0
        %v740 = vadd.f32 %v303, %v739
        %v741 = vpop.f32.mrf.mxu0
        %v742 = vpop.f32.mrf.mxu0
        %v743 = vadd.f32 %v303, %v742
        %v744 = vpop.f32.mrf.mxu0
        %745 = vmatprep.mubr.bf16.mxu0 0
        %746 = vmatmul.mubr.bf16.gmra.mxu0 %v454
        %v747 = vpop.f32.mrf.mxu0
        %v748 = vadd.f32 %v303, %v747
        %v749 = vpop.f32.mrf.mxu0
        %v750 = vpop.f32.mrf.mxu0
        %v751 = vadd.f32 %v303, %v750
        %v752 = vpop.f32.mrf.mxu0
        %753 = vmatprep.mubr.bf16.mxu0 0
        %754 = vmatmul.mubr.bf16.gmra.mxu0 %v455
        %v755 = vpop.f32.mrf.mxu0
        %v756 = vadd.f32 %v303, %v755
        %v757 = vpop.f32.mrf.mxu0
        %v758 = vpop.f32.mrf.mxu0
        %v759 = vadd.f32 %v303, %v758
        %v760 = vpop.f32.mrf.mxu0
        %761 = vmatprep.mubr.bf16.mxu0 0
        %762 = vmatmul.mubr.bf16.gmra.mxu0 %v456
        %v763 = vpop.f32.mrf.mxu0
        %v764 = vadd.f32 %v303, %v763
        %v765 = vpop.f32.mrf.mxu0
        %v766 = vpop.f32.mrf.mxu0
        %v767 = vadd.f32 %v303, %v766
        %v768 = vpop.f32.mrf.mxu0
        %769 = vmatprep.mubr.bf16.mxu0 0
        %770 = vmatmul.mubr.bf16.gmra.mxu0 %v457
        %v771 = vpop.f32.mrf.mxu0
        %v772 = vadd.f32 %v303, %v771
        %v773 = vpop.f32.mrf.mxu0
        %v774 = vpop.f32.mrf.mxu0
        %v775 = vadd.f32 %v303, %v774
        %v776 = vpop.f32.mrf.mxu0
        %777 = vmatprep.mubr.bf16.mxu0 0
        %778 = vmatmul.mubr.bf16.gmra.mxu0 %v458
        %v779 = vpop.f32.mrf.mxu0
        %v780 = vadd.f32 %v303, %v779
        %v781 = vpop.f32.mrf.mxu0
        %v782 = vpop.f32.mrf.mxu0
        %v783 = vadd.f32 %v303, %v782
        %v784 = vpop.f32.mrf.mxu0
        %785 = vmatprep.mubr.bf16.mxu0 0
        %786 = vmatmul.mubr.bf16.gmra.mxu0 %v459
        %v787 = vpop.f32.mrf.mxu0
        %v788 = vadd.f32 %v303, %v787
        %v789 = vpop.f32.mrf.mxu0
        %v790 = vpop.f32.mrf.mxu0
        %v791 = vadd.f32 %v303, %v790
        %v792 = vpop.f32.mrf.mxu0
        %793 = vmatprep.mubr.bf16.mxu0 0
        %794 = vmatmul.mubr.bf16.gmra.mxu0 %v460
        %v795 = vpop.f32.mrf.mxu0
        %v796 = vadd.f32 %v303, %v795
        %v797 = vpop.f32.mrf.mxu0
        %v798 = vpop.f32.mrf.mxu0
        %v799 = vadd.f32 %v303, %v798
        %v800 = vpop.f32.mrf.mxu0
        %801 = vmatprep.mubr.bf16.mxu0 0
        %802 = vmatmul.mubr.bf16.gmra.mxu0 %v461
        %v803 = vpop.f32.mrf.mxu0
        %v804 = vadd.f32 %v303, %v803
        %v805 = vpop.f32.mrf.mxu0
        %v806 = vpop.f32.mrf.mxu0
        %v807 = vadd.f32 %v303, %v806
        %v808 = vpop.f32.mrf.mxu0
        %809 = vmatprep.mubr.bf16.mxu0 0
        %810 = vmatmul.mubr.bf16.gmra.mxu0 %v462
        %v811 = vpop.f32.mrf.mxu0
        %v812 = vadd.f32 %v303, %v811
        %v813 = vpop.f32.mrf.mxu0
        %v814 = vpop.f32.mrf.mxu0
        %v815 = vadd.f32 %v303, %v814
        %v816 = vpop.f32.mrf.mxu0
        %817 = vmatprep.mubr.bf16.mxu0 0
        %818 = vmatmul.mubr.bf16.gmra.mxu0 %v463
        %v819 = vpop.f32.mrf.mxu0
        %v820 = vadd.f32 %v303, %v819
        %v821 = vpop.f32.mrf.mxu0
        %v822 = vpop.f32.mrf.mxu0
        %v823 = vadd.f32 %v303, %v822
        %v824 = vpop.f32.mrf.mxu0
        %825 = vmatprep.mubr.bf16.mxu0 0
        %826 = vmatmul.mubr.bf16.gmra.mxu0 %v464
        %v827 = vpop.f32.mrf.mxu0
        %v828 = vadd.f32 %v303, %v827
        %v829 = vpop.f32.mrf.mxu0
        %v830 = vpop.f32.mrf.mxu0
        %v831 = vadd.f32 %v303, %v830
        %v832 = vpop.f32.mrf.mxu0
        %833 = vdwg.mxu0
        %v834 = vmax.f32 %v580, 0.0
        %v835 = vmax.f32 %v583, 0.0
        %v836 = vmax.f32 %v588, 0.0
        %v837 = vmax.f32 %v591, 0.0
        %v838 = vmax.f32 %v596, 0.0
        %v839 = vmax.f32 %v599, 0.0
        %v840 = vmax.f32 %v604, 0.0
        %v841 = vmax.f32 %v607, 0.0
        %v842 = vmax.f32 %v612, 0.0
        %v843 = vmax.f32 %v615, 0.0
        %v844 = vmax.f32 %v620, 0.0
        %v845 = vmax.f32 %v623, 0.0
        %v846 = vmax.f32 %v628, 0.0
        %v847 = vmax.f32 %v631, 0.0
        %v848 = vmax.f32 %v636, 0.0
        %v849 = vmax.f32 %v639, 0.0
        %v850 = vmax.f32 %v644, 0.0
        %v851 = vmax.f32 %v647, 0.0
        %v852 = vmax.f32 %v652, 0.0
        %v853 = vmax.f32 %v655, 0.0
        %v854 = vmax.f32 %v660, 0.0
        %v855 = vmax.f32 %v663, 0.0
        %v856 = vmax.f32 %v668, 0.0
        %v857 = vmax.f32 %v671, 0.0
        %v858 = vmax.f32 %v676, 0.0
        %v859 = vmax.f32 %v679, 0.0
        %v860 = vmax.f32 %v684, 0.0
        %v861 = vmax.f32 %v687, 0.0
        %v862 = vmax.f32 %v692, 0.0
        %v863 = vmax.f32 %v695, 0.0
        %v864 = vmax.f32 %v700, 0.0
        %v865 = vmax.f32 %v703, 0.0
        %v866 = vmax.f32 %v708, 0.0
        %v867 = vmax.f32 %v711, 0.0
        %v868 = vmax.f32 %v716, 0.0
        %v869 = vmax.f32 %v719, 0.0
        %v870 = vmax.f32 %v724, 0.0
        %v871 = vmax.f32 %v727, 0.0
        %v872 = vmax.f32 %v732, 0.0
        %v873 = vmax.f32 %v735, 0.0
        %v874 = vmax.f32 %v740, 0.0
        %v875 = vmax.f32 %v743, 0.0
        %v876 = vmax.f32 %v748, 0.0
        %v877 = vmax.f32 %v751, 0.0
        %v878 = vmax.f32 %v756, 0.0
        %v879 = vmax.f32 %v759, 0.0
        %v880 = vmax.f32 %v764, 0.0
        %v881 = vmax.f32 %v767, 0.0
        %v882 = vmax.f32 %v772, 0.0
        %v883 = vmax.f32 %v775, 0.0
        %v884 = vmax.f32 %v780, 0.0
        %v885 = vmax.f32 %v783, 0.0
        %v886 = vmax.f32 %v788, 0.0
        %v887 = vmax.f32 %v791, 0.0
        %v888 = vmax.f32 %v796, 0.0
        %v889 = vmax.f32 %v799, 0.0
        %v890 = vmax.f32 %v804, 0.0
        %v891 = vmax.f32 %v807, 0.0
        %v892 = vmax.f32 %v812, 0.0
        %v893 = vmax.f32 %v815, 0.0
        %v894 = vmax.f32 %v820, 0.0
        %v895 = vmax.f32 %v823, 0.0
        %v896 = vmax.f32 %v828, 0.0
        %v897 = vmax.f32 %v831, 0.0
        %v898 = vpack.c.bf16 %v835, %v834
        %v899 = vpack.c.bf16 %v837, %v836
        %v900 = vpack.c.bf16 %v839, %v838
        %v901 = vpack.c.bf16 %v841, %v840
        %v902 = vpack.c.bf16 %v843, %v842
        %v903 = vpack.c.bf16 %v845, %v844
        %v904 = vpack.c.bf16 %v847, %v846
        %v905 = vpack.c.bf16 %v849, %v848
        %v906 = vpack.c.bf16 %v851, %v850
        %v907 = vpack.c.bf16 %v853, %v852
        %v908 = vpack.c.bf16 %v855, %v854
        %v909 = vpack.c.bf16 %v857, %v856
        %v910 = vpack.c.bf16 %v859, %v858
        %v911 = vpack.c.bf16 %v861, %v860
        %v912 = vpack.c.bf16 %v863, %v862
        %v913 = vpack.c.bf16 %v865, %v864
        %v914 = vpack.c.bf16 %v867, %v866
        %v915 = vpack.c.bf16 %v869, %v868
        %v916 = vpack.c.bf16 %v871, %v870
        %v917 = vpack.c.bf16 %v873, %v872
        %v918 = vpack.c.bf16 %v875, %v874
        %v919 = vpack.c.bf16 %v877, %v876
        %v920 = vpack.c.bf16 %v879, %v878
        %v921 = vpack.c.bf16 %v881, %v880
        %v922 = vpack.c.bf16 %v883, %v882
        %v923 = vpack.c.bf16 %v885, %v884
        %v924 = vpack.c.bf16 %v887, %v886
        %v925 = vpack.c.bf16 %v889, %v888
        %v926 = vpack.c.bf16 %v891, %v890
        %v927 = vpack.c.bf16 %v893, %v892
        %v928 = vpack.c.bf16 %v895, %v894
        %v929 = vpack.c.bf16 %v897, %v896
        %v962 = vunpack.c.l.b16 %v898
        %v963 = vunpack.c.h.b16 %v898
        %v964 = vunpack.c.l.b16 %v899
        %v965 = vunpack.c.h.b16 %v899
        %v966 = vunpack.c.l.b16 %v900
        %v967 = vunpack.c.h.b16 %v900
        %v968 = vunpack.c.l.b16 %v901
        %v969 = vunpack.c.h.b16 %v901
        %v970 = vunpack.c.l.b16 %v902
        %v971 = vunpack.c.h.b16 %v902
        %v972 = vunpack.c.l.b16 %v903
        %v973 = vunpack.c.h.b16 %v903
        %v974 = vunpack.c.l.b16 %v904
        %v975 = vunpack.c.h.b16 %v904
        %v976 = vunpack.c.l.b16 %v905
        %v977 = vunpack.c.h.b16 %v905
        %v978 = vunpack.c.l.b16 %v906
        %v979 = vunpack.c.h.b16 %v906
        %v980 = vunpack.c.l.b16 %v907
        %v981 = vunpack.c.h.b16 %v907
        %v982 = vunpack.c.l.b16 %v908
        %v983 = vunpack.c.h.b16 %v908
        %v984 = vunpack.c.l.b16 %v909
        %v985 = vunpack.c.h.b16 %v909
        %v986 = vunpack.c.l.b16 %v910
        %v987 = vunpack.c.h.b16 %v910
        %v988 = vunpack.c.l.b16 %v911
        %v989 = vunpack.c.h.b16 %v911
        %v990 = vunpack.c.l.b16 %v912
        %v991 = vunpack.c.h.b16 %v912
        %v992 = vunpack.c.l.b16 %v913
        %v993 = vunpack.c.h.b16 %v913
        %v994 = vunpack.c.l.b16 %v914
        %v995 = vunpack.c.h.b16 %v914
        %v996 = vunpack.c.l.b16 %v915
        %v997 = vunpack.c.h.b16 %v915
        %v998 = vunpack.c.l.b16 %v916
        %v999 = vunpack.c.h.b16 %v916
        %v1000 = vunpack.c.l.b16 %v917
        %v1001 = vunpack.c.h.b16 %v917
        %v1002 = vunpack.c.l.b16 %v918
        %v1003 = vunpack.c.h.b16 %v918
        %v1004 = vunpack.c.l.b16 %v919
        %v1005 = vunpack.c.h.b16 %v919
        %v1006 = vunpack.c.l.b16 %v920
        %v1007 = vunpack.c.h.b16 %v920
        %v1008 = vunpack.c.l.b16 %v921
        %v1009 = vunpack.c.h.b16 %v921
        %v1010 = vunpack.c.l.b16 %v922
        %v1011 = vunpack.c.h.b16 %v922
        %v1012 = vunpack.c.l.b16 %v923
        %v1013 = vunpack.c.h.b16 %v923
        %v1014 = vunpack.c.l.b16 %v924
        %v1015 = vunpack.c.h.b16 %v924
        %v1016 = vunpack.c.l.b16 %v925
        %v1017 = vunpack.c.h.b16 %v925
        %v1018 = vunpack.c.l.b16 %v926
        %v1019 = vunpack.c.h.b16 %v926
        %v1020 = vunpack.c.l.b16 %v927
        %v1021 = vunpack.c.h.b16 %v927
        %v1022 = vunpack.c.l.b16 %v928
        %v1023 = vunpack.c.h.b16 %v928
        %v1024 = vunpack.c.l.b16 %v929
        %v1025 = vunpack.c.h.b16 %v929
        %v1026 = vpack.c.b16 %v962, %v962
        %v1027 = vpack.c.b16 %v963, %v963
        %v1028 = vpack.c.b16 %v964, %v964
        %v1029 = vpack.c.b16 %v965, %v965
        %v1030 = vpack.c.b16 %v966, %v966
        %v1031 = vpack.c.b16 %v967, %v967
        %v1032 = vpack.c.b16 %v968, %v968
        %v1033 = vpack.c.b16 %v969, %v969
        %v1034 = vpack.c.b16 %v970, %v970
        %v1035 = vpack.c.b16 %v971, %v971
        %v1036 = vpack.c.b16 %v972, %v972
        %v1037 = vpack.c.b16 %v973, %v973
        %v1038 = vpack.c.b16 %v974, %v974
        %v1039 = vpack.c.b16 %v975, %v975
        %v1040 = vpack.c.b16 %v976, %v976
        %v1041 = vpack.c.b16 %v977, %v977
        %v1042 = vpack.c.b16 %v978, %v978
        %v1043 = vpack.c.b16 %v979, %v979
        %v1044 = vpack.c.b16 %v980, %v980
        %v1045 = vpack.c.b16 %v981, %v981
        %v1046 = vpack.c.b16 %v982, %v982
        %v1047 = vpack.c.b16 %v983, %v983
        %v1048 = vpack.c.b16 %v984, %v984
        %v1049 = vpack.c.b16 %v985, %v985
        %v1050 = vpack.c.b16 %v986, %v986
        %v1051 = vpack.c.b16 %v987, %v987
        %v1052 = vpack.c.b16 %v988, %v988
        %v1053 = vpack.c.b16 %v989, %v989
        %v1054 = vpack.c.b16 %v990, %v990
        %v1055 = vpack.c.b16 %v991, %v991
        %v1056 = vpack.c.b16 %v992, %v992
        %v1057 = vpack.c.b16 %v993, %v993
        %v1058 = vpack.c.b16 %v994, %v994
        %v1059 = vpack.c.b16 %v995, %v995
        %v1060 = vpack.c.b16 %v996, %v996
        %v1061 = vpack.c.b16 %v997, %v997
        %v1062 = vpack.c.b16 %v998, %v998
        %v1063 = vpack.c.b16 %v999, %v999
        %v1064 = vpack.c.b16 %v1000, %v1000
        %v1065 = vpack.c.b16 %v1001, %v1001
        %v1066 = vpack.c.b16 %v1002, %v1002
        %v1067 = vpack.c.b16 %v1003, %v1003
        %v1068 = vpack.c.b16 %v1004, %v1004
        %v1069 = vpack.c.b16 %v1005, %v1005
        %v1070 = vpack.c.b16 %v1006, %v1006
        %v1071 = vpack.c.b16 %v1007, %v1007
        %v1072 = vpack.c.b16 %v1008, %v1008
        %v1073 = vpack.c.b16 %v1009, %v1009
        %v1074 = vpack.c.b16 %v1010, %v1010
        %v1075 = vpack.c.b16 %v1011, %v1011
        %v1076 = vpack.c.b16 %v1012, %v1012
        %v1077 = vpack.c.b16 %v1013, %v1013
        %v1078 = vpack.c.b16 %v1014, %v1014
        %v1079 = vpack.c.b16 %v1015, %v1015
        %v1080 = vpack.c.b16 %v1016, %v1016
        %v1081 = vpack.c.b16 %v1017, %v1017
        %v1082 = vpack.c.b16 %v1018, %v1018
        %v1083 = vpack.c.b16 %v1019, %v1019
        %v1084 = vpack.c.b16 %v1020, %v1020
        %v1085 = vpack.c.b16 %v1021, %v1021
        %v1086 = vpack.c.b16 %v1022, %v1022
        %v1087 = vpack.c.b16 %v1023, %v1023
        %v1088 = vpack.c.b16 %v1024, %v1024
        %v1089 = vpack.c.b16 %v1025, %v1025
        %1154 = vst [vmem:[%s202] sm:$0xf] %v1026
        %1155 = vst [vmem:[%s202 + $0x4] sm:$0xf] %v1027
        %1156 = vst [vmem:[%s202 + $0x8] sm:$0xf] %v1028
        %1157 = vst [vmem:[%s202 + $0xc] sm:$0xf] %v1029
        %1158 = vst [vmem:[%s202 + $0x10] sm:$0xf] %v1030
        %1159 = vst [vmem:[%s202 + $0x14] sm:$0xf] %v1031
        %1160 = vst [vmem:[%s202 + $0x18] sm:$0xf] %v1032
        %1161 = vst [vmem:[%s202 + $0x1c] sm:$0xf] %v1033
        %1162 = vst [vmem:[%s202 + $0x20] sm:$0xf] %v1034
        %1163 = vst [vmem:[%s202 + $0x24] sm:$0xf] %v1035
        %1164 = vst [vmem:[%s202 + $0x28] sm:$0xf] %v1036
        %1165 = vst [vmem:[%s202 + $0x2c] sm:$0xf] %v1037
        %1166 = vst [vmem:[%s202 + $0x30] sm:$0xf] %v1038
        %1167 = vst [vmem:[%s202 + $0x34] sm:$0xf] %v1039
        %1168 = vst [vmem:[%s202 + $0x38] sm:$0xf] %v1040
        %1169 = vst [vmem:[%s202 + $0x3c] sm:$0xf] %v1041
        %1170 = vst [vmem:[%s202 + $0x40] sm:$0xf] %v1042
        %1171 = vst [vmem:[%s202 + $0x44] sm:$0xf] %v1043
        %1172 = vst [vmem:[%s202 + $0x48] sm:$0xf] %v1044
        %1173 = vst [vmem:[%s202 + $0x4c] sm:$0xf] %v1045
        %1174 = vst [vmem:[%s202 + $0x50] sm:$0xf] %v1046
        %1175 = vst [vmem:[%s202 + $0x54] sm:$0xf] %v1047
        %1176 = vst [vmem:[%s202 + $0x58] sm:$0xf] %v1048
        %1177 = vst [vmem:[%s202 + $0x5c] sm:$0xf] %v1049
        %1178 = vst [vmem:[%s202 + $0x60] sm:$0xf] %v1050
        %1179 = vst [vmem:[%s202 + $0x64] sm:$0xf] %v1051
        %1180 = vst [vmem:[%s202 + $0x68] sm:$0xf] %v1052
        %1181 = vst [vmem:[%s202 + $0x6c] sm:$0xf] %v1053
        %1182 = vst [vmem:[%s202 + $0x70] sm:$0xf] %v1054
        %1183 = vst [vmem:[%s202 + $0x74] sm:$0xf] %v1055
        %1184 = vst [vmem:[%s202 + $0x78] sm:$0xf] %v1056
        %1185 = vst [vmem:[%s202 + $0x7c] sm:$0xf] %v1057
        %1186 = vst [vmem:[%s202 + $0x80] sm:$0xf] %v1058
        %1187 = vst [vmem:[%s202 + $0x84] sm:$0xf] %v1059
        %1188 = vst [vmem:[%s202 + $0x88] sm:$0xf] %v1060
        %1189 = vst [vmem:[%s202 + $0x8c] sm:$0xf] %v1061
        %1190 = vst [vmem:[%s202 + $0x90] sm:$0xf] %v1062
        %1191 = vst [vmem:[%s202 + $0x94] sm:$0xf] %v1063
        %1192 = vst [vmem:[%s202 + $0x98] sm:$0xf] %v1064
        %1193 = vst [vmem:[%s202 + $0x9c] sm:$0xf] %v1065
        %1194 = vst [vmem:[%s202 + $0xa0] sm:$0xf] %v1066
        %1195 = vst [vmem:[%s202 + $0xa4] sm:$0xf] %v1067
        %1196 = vst [vmem:[%s202 + $0xa8] sm:$0xf] %v1068
        %1197 = vst [vmem:[%s202 + $0xac] sm:$0xf] %v1069
        %1198 = vst [vmem:[%s202 + $0xb0] sm:$0xf] %v1070
        %1199 = vst [vmem:[%s202 + $0xb4] sm:$0xf] %v1071
        %1200 = vst [vmem:[%s202 + $0xb8] sm:$0xf] %v1072
        %1201 = vst [vmem:[%s202 + $0xbc] sm:$0xf] %v1073
        %1202 = vst [vmem:[%s202 + $0xc0] sm:$0xf] %v1074
        %1203 = vst [vmem:[%s202 + $0xc4] sm:$0xf] %v1075
        %1204 = vst [vmem:[%s202 + $0xc8] sm:$0xf] %v1076
        %1205 = vst [vmem:[%s202 + $0xcc] sm:$0xf] %v1077
        %1206 = vst [vmem:[%s202 + $0xd0] sm:$0xf] %v1078
        %1207 = vst [vmem:[%s202 + $0xd4] sm:$0xf] %v1079
        %1208 = vst [vmem:[%s202 + $0xd8] sm:$0xf] %v1080
        %1209 = vst [vmem:[%s202 + $0xdc] sm:$0xf] %v1081
        %1210 = vst [vmem:[%s202 + $0xe0] sm:$0xf] %v1082
        %1211 = vst [vmem:[%s202 + $0xe4] sm:$0xf] %v1083
        %1212 = vst [vmem:[%s202 + $0xe8] sm:$0xf] %v1084
        %1213 = vst [vmem:[%s202 + $0xec] sm:$0xf] %v1085
        %1214 = vst [vmem:[%s202 + $0xf0] sm:$0xf] %v1086
        %1215 = vst [vmem:[%s202 + $0xf4] sm:$0xf] %v1087
        %1216 = vst [vmem:[%s202 + $0xf8] sm:$0xf] %v1088
        %1217 = vst [vmem:[%s202 + $0xfc] sm:$0xf] %v1089
        %s1218 = sand.u32 %s117, 1
        %s1219 = scalar_lea.sflag [#allocation3], %s1218
        %s1220 = sand.u32 %s117, 1
        %s1221 = smul.addr %s1220, 256
        %s1222 = scalar_lea.vmem [#allocation2], %s1221
        // Predicated region
        $region33: #{_conv_generic_jit.1} parent=31 // pred_check
          %p1223 = pneg %p127
        $region34: #{_conv_generic_jit.1} parent=31 // pred_check_branch
          %1225 = sbr.rel (%p1223) target = $region36
        $region35: #{_conv_generic_jit.1} parent=31 // pred_region
          %s1226 = smul.u32 64, %s21
          %s1228 = ssub.s32 4096, 4096
          %1229 = vsyncadd %s1219, %s1228
          %s1230 = sadd.s32 %s22, %s1226
          %s1231 = smul.addr %s1230, 64
          %s1232 = scalar_lea.hbm %s3, %s1231
          %s1233 = sshll.u32 %s1222, 4
          %s1234 = int_to_ptr.vmem [resolvable:$true] %s1233
          %1239 = dma.vmem_to_hbm [thread:$0]  %s1234, 4096, %s1232, %s1219, 64, 64, 4
        $region36: #{_conv_generic_jit.1} parent=31 // pred_fallthru
          _
      $region32: #{_conv_generic_jit.1} parent=5 // pred_fallthru
        _
      %p1240 = scmp.le.s32.totalorder 2, %s12
      // Predicated region
      $region37: #{_conv_generic_jit.1} parent=5 // pred_check
        %p1241 = pneg %p1240
      $region38: #{_conv_generic_jit.1} parent=5 // pred_check_branch
        %1243 = sbr.rel (%p1241) target = $region40
      $region39: #{_conv_generic_jit.1} parent=5 // pred_region
        %s1244 = ssub.s32 %s12, 2
        // Predicated region
        $region41: #{_conv_generic_jit.1} parent=39 // pred_check
          %p1245 = pneg %p133
        $region42: #{_conv_generic_jit.1} parent=39 // pred_check_branch
          %1247 = sbr.rel (%p1245) target = $region44
        $region43: #{_conv_generic_jit.1} parent=39 // pred_region
          %s1248 = sand.u32 %s118, 1
          %s1249 = scalar_lea.sflag [#allocation3], %s1248
          %s1250 = sand.u32 %s118, 1
          %s1251 = smul.addr %s1250, 256
          %s1252 = scalar_lea.vmem [#allocation2], %s1251
          %1253 = dma.done %s1249, 4096
        $region44: #{_conv_generic_jit.1} parent=39 // pred_fallthru
          _
      $region40: #{_conv_generic_jit.1} parent=5 // pred_fallthru
        _
    $region6: #{_conv_generic_jit.1} parent=1 // loop_footer
      %s16 = sadd.s32 1, %s12
    $region7: #{_conv_generic_jit.1} parent=1 // loop_footer_branch
      %11 = sbr.rel target = $region3
    $region8: #{_conv_generic_jit.1} parent=1 // loop_exit
      _
    %1254 = vsyncpa [#allocation3], 1
    %s1255 = scalar_lea.sflag [#allocation3], 1
    %1256 = vsyncpa %s1255, 1

</llo_original>
